<compile_context>
chip_gen: v7x
topology: tpu7x:2x2x1
jax: 0.10.0
libtpu: 0.0.40
codegen_flags: <defaults>
</compile_context>

<pallas_src>
import functools

import jax
import jax.numpy as jnp
from jax.experimental import pallas as pl
from jax.experimental.pallas import tpu as pltpu


def _round_up(x, m):
    return (x + m - 1) // m * m


# ----------------------------------------------------------------------------
# Pallas kernel.
# grid = (num_row_tiles, num_vocab_tiles); vocab is the innermost ("arbitrary")
# reduction axis.  Per row tile we carry an online log-sum-exp (running max m,
# running sum l) in VMEM scratch across vocab tiles, then at the last vocab
# step combine it with the pre-gathered target logit + mask and emit a
# lane-dense (1,1,128) partial holding (num, den) in lanes 0/1.
# ----------------------------------------------------------------------------
def _lm_loss_kernel(h_ref, w_ref, tm_ref, out_ref, m_sc, l_sc, *, n_pad_cols):
    v = pl.program_id(1)
    nv = pl.num_programs(1)

    @pl.when(v == 0)
    def _():
        m_sc[...] = jnp.full(m_sc.shape, -jnp.inf, m_sc.dtype)
        l_sc[...] = jnp.zeros_like(l_sc)

    h = h_ref[...]                                   # (RT, D)  bf16
    w = w_ref[...]                                   # (D, VT)  bf16
    logits = jnp.dot(h, w, preferred_element_type=jnp.float32)   # (RT, VT) f32

    # Online log-sum-exp across vocab tiles (no per-element pad masking:
    # padded columns of W are exactly zero -> logit exactly 0; corrected in
    # closed form at finalize).
    m_prev = m_sc[...]
    m_new = jnp.maximum(m_prev, jnp.max(logits, axis=-1, keepdims=True))
    l_sc[...] = (l_sc[...] * jnp.exp(m_prev - m_new)
                 + jnp.sum(jnp.exp(logits - m_new), axis=-1, keepdims=True))
    m_sc[...] = m_new

    @pl.when(v == nv - 1)
    def _():
        tm = tm_ref[...]                             # (RT, 2) f32
        tl = tm[:, 0:1]                              # pre-gathered target logit
        msk = tm[:, 1:2]
        l = l_sc[...]
        if n_pad_cols:                               # static: only when V padded
            # Padded columns contributed exactly exp(0 - m) each.
            l = l - n_pad_cols * jnp.exp(-m_sc[...])
        lse = jnp.log(l) + m_sc[...]                 # (RT, 1)
        nll = (lse - tl) * msk                       # -logp[target] * mask
        num = jnp.sum(nll)
        den = jnp.sum(msk)
        lane = jax.lax.broadcasted_iota(jnp.int32, out_ref.shape, 2)
        out_ref[...] = jnp.where(lane == 0, num,
                                 jnp.where(lane == 1, den, 0.0))


def lm_criterion_pallas(hidden, w_out, targets, mask, *,
                        row_tile=1024, v_tile=1024):
    """LanguageModelCriterion: -sum(logp[target] * mask) / sum(mask).

    hidden : (B, T, D)   w_out : (D, V)   targets/mask : (B, T)

    Tile guidance: W is re-streamed from HBM once per row tile, so keep
    row_tile above the compute/memory crossover: >= ~256 on v5e,
    ~768-1024 on v6e, ~512-1024 on v7x; v_tile 512-1024 keeps the f32 logits
    temp + double-buffered bf16 W/h tiles under the 32 MiB default scoped
    VMEM (and under v7x's 64 MiB physical VMEM).

    NOTE: returns NaN when sum(mask) == 0, matching the PyTorch criterion.
    """
    B, T, D = hidden.shape
    V = w_out.shape[1]
    R = B * T

    RT = min(row_tile, _round_up(R, 8))          # multiple of 8 (sublane)
    # v7x megacore: keep >= 2 row tiles when the row count allows it so both
    # TensorCores get work (harmless ~0.35us extra grid step elsewhere).
    if R > 8 and _round_up(R, RT) == RT:
        RT = _round_up((R + 1) // 2, 8)
    R_pad = _round_up(R, RT)

    VT = min(v_tile, _round_up(V, 128))          # multiple of 128 (lane)
    V_pad = _round_up(V, VT)
    n_rt = R_pad // RT
    n_vt = V_pad // VT

    # bf16 operands for the MXU; accumulation stays f32 inside the kernel.
    h = hidden.reshape(R, D).astype(jnp.bfloat16)
    w = w_out.astype(jnp.bfloat16)

    # Target logit gathered OUTSIDE the vocab loop: tl[r] = h[r,:] . w[:,tgt[r]]
    # (bf16 operands, f32 accumulation -> same precision path as the kernel).
    tgt = targets.reshape(R).astype(jnp.int32)
    w_cols = jnp.take(w, tgt, axis=1)                           # (D, R) bf16
    tl = jnp.einsum('rd,dr->r', h, w_cols,
                    preferred_element_type=jnp.float32)         # (R,) f32

    # Merge target logit + mask into a single (rows, 2) block.
    tm = jnp.stack([tl, mask.reshape(R).astype(jnp.float32)], axis=-1)

    # Row / vocab / D padding (zeros).  D alignment: 128 everywhere; bump to
    # 256 on v6e/v7x for full 256x256 MXU passes once compute-bound.
    D_pad = _round_up(D, 128)
    if D_pad != D:
        h = jnp.pad(h, ((0, 0), (0, D_pad - D)))
        w = jnp.pad(w, ((0, D_pad - D), (0, 0)))
    if R_pad != R:
        h = jnp.pad(h, ((0, R_pad - R), (0, 0)))
        tm = jnp.pad(tm, ((0, R_pad - R), (0, 0)))   # pad rows: tl=0, mask=0
    if V_pad != V:
        w = jnp.pad(w, ((0, 0), (0, V_pad - V)))     # zero cols -> logit == 0

    kernel = functools.partial(_lm_loss_kernel, n_pad_cols=V_pad - V)

    # Rough VMEM budget (double-buffered inputs + logits temps + scratch).
    est = (2 * D_pad * VT * 2           # W tiles (bf16, double-buffered)
           + 2 * RT * D_pad * 2         # hidden tiles (bf16, double-buffered)
           + 2 * RT * VT * 4            # (RT,VT) f32 logits/exp temporaries
           + 2 * RT * 128 * 4           # tm block (lane-padded)
           + 2 * RT * 128 * 4           # m/l scratch (lane-padded)
           + 2 * 128 * 4)               # output partial
    DEFAULT_SCOPED = 32 * 1024 * 1024
    try:
        phys_vmem = pltpu.get_tpu_info().vmem_capacity_bytes
    except Exception:                    # conservative fallback = v7x size
        phys_vmem = 64 * 1024 * 1024
    cap = int(0.6 * phys_vmem)
    want = int(1.5 * est)
    cp_kwargs = dict(dimension_semantics=("parallel", "arbitrary"))
    if want > DEFAULT_SCOPED:
        # Only ever RAISE above the default scoped limit; stay well under the
        # chip's physical VMEM.
        cp_kwargs["vmem_limit_bytes"] = max(DEFAULT_SCOPED, min(want, cap))

    partials = pl.pallas_call(
        kernel,
        out_shape=jax.ShapeDtypeStruct((n_rt, 1, 128), jnp.float32),
        grid_spec=pltpu.PrefetchScalarGridSpec(
            num_scalar_prefetch=0,
            grid=(n_rt, n_vt),                       # rows parallel, vocab innermost
            in_specs=[
                pl.BlockSpec((RT, D_pad), lambda r, v: (r, 0)),  # hidden (resident over v)
                pl.BlockSpec((D_pad, VT), lambda r, v: (0, v)),  # streaming W vocab tile
                pl.BlockSpec((RT, 2), lambda r, v: (r, 0)),      # merged target-logit+mask
            ],
            out_specs=pl.BlockSpec((1, 1, 128), lambda r, v: (r, 0, 0)),
            scratch_shapes=[
                pltpu.VMEM((RT, 1), jnp.float32),    # running max
                pltpu.VMEM((RT, 1), jnp.float32),    # running sum-exp
            ],
        ),
        compiler_params=pltpu.CompilerParams(**cp_kwargs),
    )(h, w, tm)

    num = jnp.sum(partials[:, 0, 0])
    den = jnp.sum(partials[:, 0, 1])
    # NOTE: identical to the PyTorch criterion — NaN if sum(mask) == 0.
    return num / den


# ----------------------------------------------------------------------------
# LossWrapper equivalent (JAX glue + Pallas criterion).
# ----------------------------------------------------------------------------
class LossWrapperJAX:
    def __init__(self, key, vocab_size, d_model, fc_dim, *,
                 row_tile=1024, v_tile=1024):
        k1, k2, k3 = jax.random.split(key, 3)
        # deterministic synthetic "model" parameters
        self.embed = 0.02 * jax.random.normal(k1, (vocab_size, d_model), jnp.float32)
        self.w_fc = 0.02 * jax.random.normal(k2, (fc_dim, d_model), jnp.float32)
        self.w_out = 0.02 * jax.random.normal(k3, (d_model, vocab_size), jnp.float32)
        self.row_tile = row_tile
        self.v_tile = v_tile

    def _model(self, fc_feats, labels):
        # synthetic stand-in for self.model(...): token embedding + fc context
        tok = self.embed[labels[:, :-1]]                 # (B, T, D)
        ctx = fc_feats.astype(jnp.float32) @ self.w_fc   # (B, D)
        return tok + ctx[:, None, :]                     # hidden (B, T, D)

    def forward(self, rank, fc_feats, att_feats, densecap, labels, masks,
                att_masks, personality, sc_flag):
        out = {}
        hidden = self._model(fc_feats, labels)
        if not sc_flag:
            # crit = LanguageModelCriterion (opt.label_smoothing == 0)
            out["loss"] = lm_criterion_pallas(
                hidden, self.w_out, labels[:, 1:], masks[:, 1:],
                row_tile=self.row_tile, v_tile=self.v_tile)
        else:
            # TODO(synk): RewardCriterion (self-critical RL) branch needs
            # sampled sequences + rewards from the opaque model; not modeled.
            raise NotImplementedError("sc_flag=True branch not implemented")
        return out


def _reference_loss(hidden, w_out, targets, mask):
    # Same bf16-operand / f32-accumulation path as the kernel.
    logits = jnp.dot(hidden.astype(jnp.bfloat16), w_out.astype(jnp.bfloat16),
                     preferred_element_type=jnp.float32)
    logp = jax.nn.log_softmax(logits, axis=-1)
    tlp = jnp.take_along_axis(logp, targets[..., None].astype(jnp.int32),
                              axis=-1)[..., 0]
    return jnp.sum(-tlp * mask) / jnp.sum(mask)


if __name__ == "__main__":
    # Small shapes; tiles shrunk so multiple row tiles, multiple vocab tiles,
    # vocab padding, and the closed-form pad correction are all exercised
    # (V=320 -> V_pad=384 with v_tile=128).
    B, L, D, V, FC, ATT = 4, 17, 128, 320, 64, 8     # T = L - 1 = 16
    key = jax.random.PRNGKey(0)
    kw, kf, ka, kl = jax.random.split(key, 4)

    wrapper = LossWrapperJAX(kw, vocab_size=V, d_model=D, fc_dim=FC,
                             row_tile=32, v_tile=128)

    fc_feats = jax.random.normal(kf, (B, FC), jnp.float32)
    att_feats = jax.random.normal(ka, (B, ATT, FC), jnp.float32)  # unused by synthetic model
    labels = jax.random.randint(kl, (B, L), 1, V).astype(jnp.int32)
    labels = labels.at[:, -3:].set(0)                             # padded tail
    masks = (labels > 0).astype(jnp.float32)
    densecap, att_masks, personality, rank = None, None, None, 0

    out = wrapper.forward(rank, fc_feats, att_feats, densecap, labels, masks,
                          att_masks, personality, sc_flag=False)
    loss = jax.block_until_ready(out["loss"])

    # sanity-check against a pure-JAX reference
    hidden = wrapper._model(fc_feats, labels)
    ref = _reference_loss(hidden, wrapper.w_out, labels[:, 1:], masks[:, 1:])
    assert jnp.allclose(loss, ref, rtol=1e-3, atol=1e-3), (loss, ref)

    print("KERNEL_OK")
</pallas_src>

<mosaic_0001>
module attributes {stable_mosaic.version = 11 : i64} {
  func.func @_lm_loss_kernel(%arg0: i32, %arg1: i32, %arg2: memref<32x128xbf16, #tpu.memory_space<vmem>>, %arg3: memref<128x128xbf16, #tpu.memory_space<vmem>>, %arg4: memref<32x2xf32, #tpu.memory_space<vmem>>, %arg5: memref<1x1x128xf32, #tpu.memory_space<vmem>>, %arg6: memref<32x1xf32, #tpu.memory_space<vmem>>, %arg7: memref<32x1xf32, #tpu.memory_space<vmem>>) attributes {dimension_semantics = [#tpu.dimension_semantics<parallel>, #tpu.dimension_semantics<arbitrary>], iteration_bounds = array<i64: 2, 3>, scalar_prefetch = 0 : i64, scratch_operands = 2 : i64, tpu.core_type = #tpu.core_type<tc>, window_params = [{transform_indices = @transform_0, window_bounds = array<i64: 32, 128>}, {transform_indices = @transform_1, window_bounds = array<i64: 128, 128>}, {transform_indices = @transform_2, window_bounds = array<i64: 32, 2>}, {transform_indices = @transform_3, window_bounds = array<i64: 1, 1, 128>}]} {
    %c0_i32 = arith.constant 0 : i32
    %0 = arith.cmpi eq, %arg1, %c0_i32 : i32
    %1 = arith.extui %0 : i1 to i32
    %c0_i32_0 = arith.constant 0 : i32
    %2 = arith.cmpi ne, %1, %c0_i32_0 : i32
    scf.if %2 {
      %cst_15 = arith.constant 0xFF800000 : f32
      %25 = vector.broadcast %cst_15 : f32 to vector<32x1xf32>
      %c0_16 = arith.constant 0 : index
      %c0_17 = arith.constant 0 : index
      %26 = vector.load %arg6[%c0_16, %c0_17] : memref<32x1xf32, #tpu.memory_space<vmem>>, vector<32x1xf32>
      tpu.vector_store %arg6[%c0_16, %c0_17], %25 {strides = array<i32>} : memref<32x1xf32, #tpu.memory_space<vmem>>, vector<32x1xf32>,
      %cst_18 = arith.constant 0.000000e+00 : f32
      %27 = vector.broadcast %cst_18 : f32 to vector<32x1xf32>
      %c0_19 = arith.constant 0 : index
      %c0_20 = arith.constant 0 : index
      %28 = vector.load %arg7[%c0_19, %c0_20] : memref<32x1xf32, #tpu.memory_space<vmem>>, vector<32x1xf32>
      tpu.vector_store %arg7[%c0_19, %c0_20], %27 {strides = array<i32>} : memref<32x1xf32, #tpu.memory_space<vmem>>, vector<32x1xf32>,
    } else {
    }
    %c0 = arith.constant 0 : index
    %c0_1 = arith.constant 0 : index
    %3 = vector.load %arg2[%c0, %c0_1] : memref<32x128xbf16, #tpu.memory_space<vmem>>, vector<32x128xbf16>
    %c0_2 = arith.constant 0 : index
    %c0_3 = arith.constant 0 : index
    %4 = vector.load %arg3[%c0_2, %c0_3] : memref<128x128xbf16, #tpu.memory_space<vmem>>, vector<128x128xbf16>
    %cst = arith.constant dense<0.000000e+00> : vector<32x128xf32>
    %5 = tpu.matmul %3, %4, %cst {dimension_numbers = #tpu.dot_dimension_numbers<[1], [0], [0], [1], [0, 0, 1, 1], [], []>} : vector<32x128xbf16>, vector<128x128xbf16>, vector<32x128xf32> -> vector<32x128xf32>
    %c0_4 = arith.constant 0 : index
    %c0_5 = arith.constant 0 : index
    %6 = vector.load %arg6[%c0_4, %c0_5] : memref<32x1xf32, #tpu.memory_space<vmem>>, vector<32x1xf32>
    %cst_6 = arith.constant dense<0xFF800000> : vector<32xf32>
    %7 = vector.multi_reduction <maximumf>, %5, %cst_6 [1] : vector<32x128xf32> to vector<32xf32>
    %8 = vector.shape_cast %7 : vector<32xf32> to vector<32x1xf32>
    %9 = arith.maximumf %6, %8 : vector<32x1xf32>
    %c0_7 = arith.constant 0 : index
    %c0_8 = arith.constant 0 : index
    %10 = vector.load %arg7[%c0_7, %c0_8] : memref<32x1xf32, #tpu.memory_space<vmem>>, vector<32x1xf32>
    %11 = arith.subf %6, %9 : vector<32x1xf32>
    %12 = math.exp %11 : vector<32x1xf32>
    %13 = arith.mulf %10, %12 : vector<32x1xf32>
    %14 = vector.broadcast %9 : vector<32x1xf32> to vector<32x128xf32>
    %15 = arith.subf %5, %14 : vector<32x128xf32>
    %16 = math.exp %15 : vector<32x128xf32>
    %cst_9 = arith.constant dense<0.000000e+00> : vector<32xf32>
    %17 = vector.multi_reduction <add>, %16, %cst_9 [1] : vector<32x128xf32> to vector<32xf32>
    %18 = vector.shape_cast %17 : vector<32xf32> to vector<32x1xf32>
    %19 = arith.addf %13, %18 : vector<32x1xf32>
    %c0_10 = arith.constant 0 : index
    %c0_11 = arith.constant 0 : index
    %20 = vector.load %arg7[%c0_10, %c0_11] : memref<32x1xf32, #tpu.memory_space<vmem>>, vector<32x1xf32>
    tpu.vector_store %arg7[%c0_10, %c0_11], %19 {strides = array<i32>} : memref<32x1xf32, #tpu.memory_space<vmem>>, vector<32x1xf32>,
    %c0_12 = arith.constant 0 : index
    %c0_13 = arith.constant 0 : index
    %21 = vector.load %arg6[%c0_12, %c0_13] : memref<32x1xf32, #tpu.memory_space<vmem>>, vector<32x1xf32>
    tpu.vector_store %arg6[%c0_12, %c0_13], %9 {strides = array<i32>} : memref<32x1xf32, #tpu.memory_space<vmem>>, vector<32x1xf32>,
    %c2_i32 = arith.constant 2 : i32
    %22 = arith.cmpi eq, %arg1, %c2_i32 : i32
    %23 = arith.extui %22 : i1 to i32
    %c0_i32_14 = arith.constant 0 : i32
    %24 = arith.cmpi ne, %23, %c0_i32_14 : i32
    scf.if %24 {
      %c0_15 = arith.constant 0 : index
      %c0_16 = arith.constant 0 : index
      %25 = vector.load %arg4[%c0_15, %c0_16] : memref<32x2xf32, #tpu.memory_space<vmem>>, vector<32x2xf32>
      %26 = vector.extract_strided_slice %25 {offsets = [0, 0], sizes = [32, 1], strides = [1, 1]} : vector<32x2xf32> to vector<32x1xf32>
      %27 = vector.extract_strided_slice %25 {offsets = [0, 1], sizes = [32, 1], strides = [1, 1]} : vector<32x2xf32> to vector<32x1xf32>
      %c0_17 = arith.constant 0 : index
      %c0_18 = arith.constant 0 : index
      %28 = vector.load %arg7[%c0_17, %c0_18] : memref<32x1xf32, #tpu.memory_space<vmem>>, vector<32x1xf32>
      %c0_19 = arith.constant 0 : index
      %c0_20 = arith.constant 0 : index
      %29 = vector.load %arg6[%c0_19, %c0_20] : memref<32x1xf32, #tpu.memory_space<vmem>>, vector<32x1xf32>
      %cst_21 = arith.constant 0.000000e+00 : f32
      %30 = vector.broadcast %cst_21 : f32 to vector<32x1xf32>
      %31 = arith.subf %30, %29 : vector<32x1xf32>
      %32 = math.exp %31 : vector<32x1xf32>
      %cst_22 = arith.constant 6.400000e+01 : f32
      %33 = vector.broadcast %cst_22 : f32 to vector<32x1xf32>
      %34 = arith.mulf %33, %32 : vector<32x1xf32>
      %35 = arith.subf %28, %34 : vector<32x1xf32>
      %36 = math.log %35 : vector<32x1xf32>
      %c0_23 = arith.constant 0 : index
      %c0_24 = arith.constant 0 : index
      %37 = vector.load %arg6[%c0_23, %c0_24] : memref<32x1xf32, #tpu.memory_space<vmem>>, vector<32x1xf32>
      %38 = arith.addf %36, %37 : vector<32x1xf32>
      %39 = arith.subf %38, %26 : vector<32x1xf32>
      %40 = arith.mulf %39, %27 : vector<32x1xf32>
      %41 = vector.shape_cast %40 : vector<32x1xf32> to vector<1x32x1xf32>
      %cst_25 = arith.constant dense<0.000000e+00> : vector<1xf32>
      %42 = vector.multi_reduction <add>, %41, %cst_25 [1, 2] : vector<1x32x1xf32> to vector<1xf32>
      %43 = vector.shape_cast %42 : vector<1xf32> to vector<1x1x1xf32>
      %44 = vector.extract %43[0, 0, 0] : f32 from vector<1x1x1xf32>
      %45 = vector.shape_cast %27 : vector<32x1xf32> to vector<1x32x1xf32>
      %cst_26 = arith.constant dense<0.000000e+00> : vector<1xf32>
      %46 = vector.multi_reduction <add>, %45, %cst_26 [1, 2] : vector<1x32x1xf32> to vector<1xf32>
      %47 = vector.shape_cast %46 : vector<1xf32> to vector<1x1x1xf32>
      %48 = vector.extract %47[0, 0, 0] : f32 from vector<1x1x1xf32>
      %49 = tpu.iota {dimensions = array<i32: 2>} : vector<1x1x128xi32>
      %c0_i32_27 = arith.constant 0 : i32
      %50 = vector.broadcast %c0_i32_27 : i32 to vector<1x1x128xi32>
      %51 = arith.cmpi eq, %49, %50 : vector<1x1x128xi32>
      %c1_i32 = arith.constant 1 : i32
      %52 = vector.broadcast %c1_i32 : i32 to vector<1x1x128xi32>
      %53 = arith.cmpi eq, %49, %52 : vector<1x1x128xi32>
      %cst_28 = arith.constant 0.000000e+00 : f32
      %54 = vector.broadcast %48 : f32 to vector<1x1x128xf32>
      %55 = vector.broadcast %cst_28 : f32 to vector<1x1x128xf32>
      %56 = arith.select %53, %54, %55 : vector<1x1x128xi1>, vector<1x1x128xf32>
      %57 = vector.broadcast %44 : f32 to vector<1x1x128xf32>
      %58 = arith.select %51, %57, %56 : vector<1x1x128xi1>, vector<1x1x128xf32>
      %c0_29 = arith.constant 0 : index
      %c0_30 = arith.constant 0 : index
      %c0_31 = arith.constant 0 : index
      %59 = vector.load %arg5[%c0_29, %c0_30, %c0_31] : memref<1x1x128xf32, #tpu.memory_space<vmem>>, vector<1x1x128xf32>
      tpu.vector_store %arg5[%c0_29, %c0_30, %c0_31], %58 {strides = array<i32>} : memref<1x1x128xf32, #tpu.memory_space<vmem>>, vector<1x1x128xf32>,
    } else {
    }
    return
  }
  func.func @transform_0(%arg0: i32, %arg1: i32) -> (i32, i32) {
    %c0_i32 = arith.constant 0 : i32
    %c0_i32_0 = arith.constant 0 : i32
    return %arg0, %c0_i32 : i32, i32
  }
  func.func @transform_1(%arg0: i32, %arg1: i32) -> (i32, i32) {
    %c0_i32 = arith.constant 0 : i32
    %c0_i32_0 = arith.constant 0 : i32
    return %c0_i32, %arg1 : i32, i32
  }
  func.func @transform_2(%arg0: i32, %arg1: i32) -> (i32, i32) {
    %c0_i32 = arith.constant 0 : i32
    %c0_i32_0 = arith.constant 0 : i32
    return %arg0, %c0_i32 : i32, i32
  }
  func.func @transform_3(%arg0: i32, %arg1: i32) -> (i32, i32, i32) {
    %c0_i32 = arith.constant 0 : i32
    %c0_i32_0 = arith.constant 0 : i32
    %c0_i32_1 = arith.constant 0 : i32
    return %arg0, %c0_i32, %c0_i32_0 : i32, i32, i32
  }
}

</mosaic_0001>

<llo_original>
// kernel: tpu_custom_call.1
$region0: #{tpu_custom_call.1}
  #allocation0 [shape = 'u32[]', space=smem, size = 0x4, offset = 0x4, fixed_abs, tag = 'smem constant byte address 0x4 - core index']
  #allocation1 [shape = 'u32[144,128]{1,0:T(1,128)}', space=vmem, size = 0x12000, scoped, tag = 'internal scratch']
  #allocation2 [shape = 'f32[32,1]{1,0:T(8,128)}', space=vmem, size = 0x4000, scoped, tag = 'scratch operand']
  #allocation3 [shape = 'f32[32,1]{1,0:T(8,128)}', space=vmem, size = 0x4000, scoped, tag = 'scratch operand']
  %s0 = inlined_call_operand.vmem [shape: bf16[64,128], index: 0, kind: input, shape index: {}]
  %s1 = inlined_call_operand.hbm [shape: bf16[128,384], index: 1, kind: input, shape index: {}]
  %s2 = inlined_call_operand.vmem [shape: f32[64,2], index: 2, kind: input, shape index: {}]
  %s3 = inlined_call_operand.hbm [shape: f32[2,1,128], index: 3, kind: output, shape index: {}]
  %s4 = sld [smem:[#allocation0]]
  $region57: #{tpu_custom_call.1} parent=0
    _
  %s6 = ssub.s32 1, %s4
  %s7 = scalar_select 0, %s6, %s4
  $region1: #{tpu_custom_call.1} parent=0
    #allocation4 [shape = 'u8[65536]{0}', space=vmem, size = 0x10000, scoped, tag = 'input window, operand 1']
    #allocation5 [shape = 's32[2]{0}', space=sflag, size = 0x8, scoped, tag = 'scoped memory for tpu_custom_call.1']
    #allocation6 [shape = 's32[2]{0}', space=sflag, size = 0x8, scoped, tag = 'scoped memory for tpu_custom_call.1']
    #allocation7 [shape = 'u8[1024]{0}', space=vmem, size = 0x400, scoped, tag = 'output window, operand 0']
    %8 = vsyncpa [#allocation5], 0
    %s9 = scalar_lea.sflag [#allocation5], 1
    %10 = vsyncpa %s9, 0
    %11 = vsyncpa [#allocation6], 0
    %s12 = scalar_lea.sflag [#allocation6], 1
    %13 = vsyncpa %s12, 0
    loop: start=0, step=1, limit=8
    $region2: #{tpu_custom_call.1} parent=1 // loop_pre_header
      _
    $region3: #{tpu_custom_call.1} parent=1 // loop_header
      %s15 = sphi 0, %s19
      %p16 = scmp.ge.s32.totalorder %s15, 8
      %s22 = sphi 0, %s34
      %s23 = sphi 0, %s30
      %s24 = sphi 0, %s22
      %s25 = sphi 0, %s23
      %s26 = sphi 0, %s24
      %s27 = sphi 0, %s25
      %s37 = sphi 0, %s39
      %s40 = sphi 0, %s37
      %s41 = sphi 0, %s40
      %s57 = sphi 0, %s41
      %s63 = sphi 0, %s65
      %s66 = sphi 0, %s63
      %s67 = sphi 0, %s66
      %s83 = sphi 0, %s67
      %s89 = sphi 0, %s91
      %s92 = sphi 0, %s89
      %s93 = sphi 0, %s92
      %s109 = sphi 0, %s93
      %s115 = sphi 0, %s117
      %s118 = sphi 0, %s115
      %s119 = sphi 0, %s118
      %s135 = sphi 0, %s119
    $region4: #{tpu_custom_call.1} parent=1 // loop_header_branch
      %18 = sbr.rel (%p16) target = $region8
    $region5: #{tpu_custom_call.1} parent=1 // loop_body
      %s20 = ssub.s32 %s15, 1
      %s21 = ssub.s32 %s15, 2
      %s28 = sadd.s32 1, %s23
      %p29 = scmp.ge.s32.totalorder %s28, 3
      %s30 = scalar_select %p29, 0, %s28
      %s31 = sadd.s32 1, %s22
      %s32 = scalar_select %p29, %s31, %s22
      %p33 = scmp.ge.s32.totalorder %s32, 2
      %s34 = scalar_select %p33, 0, %s32
      %s35 = ssub.s32 %s22, %s34
      %p36 = scmp.eq.s32.totalorder %s35, 0
      %s38 = sadd.s32 %s37, 1
      %s39 = scalar_select %p36, %s37, %s38
      %p42 = pneg %p36
      %p43 = scmp.eq.s32.totalorder %s15, 5
      %p44 = por %p42, %p43
      %p45 = scmp.ne.s32.totalorder %s37, %s40
      %p46 = scmp.eq.s32.totalorder %s15, 0
      %p47 = por %p45, %p46
      %p48 = scmp.ne.s32.totalorder %s37, %s40
      %p49 = scmp.eq.s32.totalorder %s20, 5
      %p50 = por %p48, %p49
      %p51 = scmp.ne.s32.totalorder %s40, %s41
      %p52 = scmp.eq.s32.totalorder %s20, 0
      %p53 = por %p51, %p52
      %p54 = scmp.ne.s32.totalorder %s40, %s41
      %p55 = scmp.eq.s32.totalorder %s21, 5
      %p56 = por %p54, %p55
      %p58 = scmp.ne.s32.totalorder %s41, %s57
      %p59 = scmp.eq.s32.totalorder %s21, 0
      %p60 = por %p58, %p59
      %s61 = ssub.s32 %s23, %s30
      %p62 = scmp.eq.s32.totalorder %s61, 0
      %s64 = sadd.s32 %s63, 1
      %s65 = scalar_select %p62, %s63, %s64
      %p68 = pneg %p62
      %p69 = scmp.eq.s32.totalorder %s15, 5
      %p70 = por %p68, %p69
      %p71 = scmp.ne.s32.totalorder %s63, %s66
      %p72 = scmp.eq.s32.totalorder %s15, 0
      %p73 = por %p71, %p72
      %p74 = scmp.ne.s32.totalorder %s63, %s66
      %p75 = scmp.eq.s32.totalorder %s20, 5
      %p76 = por %p74, %p75
      %p77 = scmp.ne.s32.totalorder %s66, %s67
      %p78 = scmp.eq.s32.totalorder %s20, 0
      %p79 = por %p77, %p78
      %p80 = scmp.ne.s32.totalorder %s66, %s67
      %p81 = scmp.eq.s32.totalorder %s21, 5
      %p82 = por %p80, %p81
      %p84 = scmp.ne.s32.totalorder %s67, %s83
      %p85 = scmp.eq.s32.totalorder %s21, 0
      %p86 = por %p84, %p85
      %s87 = ssub.s32 %s22, %s34
      %p88 = scmp.eq.s32.totalorder %s87, 0
      %s90 = sadd.s32 %s89, 1
      %s91 = scalar_select %p88, %s89, %s90
      %p94 = pneg %p88
      %p95 = scmp.eq.s32.totalorder %s15, 5
      %p96 = por %p94, %p95
      %p97 = scmp.ne.s32.totalorder %s89, %s92
      %p98 = scmp.eq.s32.totalorder %s15, 0
      %p99 = por %p97, %p98
      %p100 = scmp.ne.s32.totalorder %s89, %s92
      %p101 = scmp.eq.s32.totalorder %s20, 5
      %p102 = por %p100, %p101
      %p103 = scmp.ne.s32.totalorder %s92, %s93
      %p104 = scmp.eq.s32.totalorder %s20, 0
      %p105 = por %p103, %p104
      %p106 = scmp.ne.s32.totalorder %s92, %s93
      %p107 = scmp.eq.s32.totalorder %s21, 5
      %p108 = por %p106, %p107
      %p110 = scmp.ne.s32.totalorder %s93, %s109
      %p111 = scmp.eq.s32.totalorder %s21, 0
      %p112 = por %p110, %p111
      %s113 = ssub.s32 %s22, %s34
      %p114 = scmp.eq.s32.totalorder %s113, 0
      %s116 = sadd.s32 %s115, 1
      %s117 = scalar_select %p114, %s115, %s116
      %p120 = pneg %p114
      %p121 = scmp.eq.s32.totalorder %s15, 5
      %p122 = por %p120, %p121
      %p123 = scmp.ne.s32.totalorder %s115, %s118
      %p124 = scmp.eq.s32.totalorder %s15, 0
      %p125 = por %p123, %p124
      %p126 = scmp.ne.s32.totalorder %s115, %s118
      %p127 = scmp.eq.s32.totalorder %s20, 5
      %p128 = por %p126, %p127
      %p129 = scmp.ne.s32.totalorder %s118, %s119
      %p130 = scmp.eq.s32.totalorder %s20, 0
      %p131 = por %p129, %p130
      %p132 = scmp.ne.s32.totalorder %s118, %s119
      %p133 = scmp.eq.s32.totalorder %s21, 5
      %p134 = por %p132, %p133
      %p136 = scmp.ne.s32.totalorder %s119, %s135
      %p137 = scmp.eq.s32.totalorder %s21, 0
      %p138 = por %p136, %p137
      %p139 = scmp.le.s32.totalorder 1, %s15
      %p140 = scmp.lt.s32.totalorder %s15, 7
      %p141 = pnand %p139, %p140
      %p142 = pneg %p141
      // Predicated region
      $region9: #{tpu_custom_call.1} parent=5 // pred_check
        _
      $region10: #{tpu_custom_call.1} parent=5 // pred_check_branch
        %144 = sbr.rel (%p141) target = $region12
      $region11: #{tpu_custom_call.1} parent=5 // pred_region
        %s145 = ssub.s32 %s15, 1
      $region12: #{tpu_custom_call.1} parent=5 // pred_fallthru
        _
      %p146 = scmp.lt.s32.totalorder %s15, 6
      // Predicated region
      $region13: #{tpu_custom_call.1} parent=5 // pred_check
        %p147 = pneg %p146
      $region14: #{tpu_custom_call.1} parent=5 // pred_check_branch
        %149 = sbr.rel (%p147) target = $region16
      $region15: #{tpu_custom_call.1} parent=5 // pred_region
        // Predicated region
        $region17: #{tpu_custom_call.1} parent=15 // pred_check
          %p150 = pneg %p47
        $region18: #{tpu_custom_call.1} parent=15 // pred_check_branch
          %152 = sbr.rel (%p150) target = $region20
        $region19: #{tpu_custom_call.1} parent=15 // pred_region
          %s153 = smul.u32 4, %s22
          %p154 = scmp.lt.s32.totalorder %s153, 7
          %s155 = scalar_select %p154, %s153, 7
          %s156 = smul.addr %s155, 4
          %s157 = scalar_lea.vmem %s0, %s156
          %s158 = smul.u32 4, %s22
        $region20: #{tpu_custom_call.1} parent=15 // pred_fallthru
          _
        // Predicated region
        $region21: #{tpu_custom_call.1} parent=15 // pred_check
          %p159 = pneg %p73
        $region22: #{tpu_custom_call.1} parent=15 // pred_check_branch
          %161 = sbr.rel (%p159) target = $region24
        $region23: #{tpu_custom_call.1} parent=15 // pred_region
          %s162 = sand.u32 %s63, 1
          %s163 = scalar_lea.sflag [#allocation5], %s162
          %s164 = sand.u32 %s63, 1
          %s165 = smul.addr %s164, 64
          %s166 = scalar_lea.vmem [#allocation4], %s165
          %s168 = ssub.s32 1024, 1024
          %169 = vsyncadd %s163, %s168
          %s170 = smul.addr %s23, 64
          %s171 = scalar_lea.hbm %s1, %s170
          %s172 = sshll.u32 %s166, 4
          %s173 = int_to_ptr.vmem [resolvable:$true] %s172
          %178 = dma.hbm_to_vmem [thread:$0]  %s171, 1024, %s173, %s163, 192, 64, 4
        $region24: #{tpu_custom_call.1} parent=15 // pred_fallthru
          _
        // Predicated region
        $region25: #{tpu_custom_call.1} parent=15 // pred_check
          %p179 = pneg %p99
        $region26: #{tpu_custom_call.1} parent=15 // pred_check_branch
          %181 = sbr.rel (%p179) target = $region28
        $region27: #{tpu_custom_call.1} parent=15 // pred_region
          %s182 = smul.u32 4, %s22
          %p183 = scmp.lt.s32.totalorder %s182, 7
          %s184 = scalar_select %p183, %s182, 7
          %s185 = smul.addr %s184, 8
          %s186 = scalar_lea.vmem %s2, %s185
          %s187 = smul.u32 4, %s22
        $region28: #{tpu_custom_call.1} parent=15 // pred_fallthru
          _
      $region16: #{tpu_custom_call.1} parent=5 // pred_fallthru
        _
      %p188 = scmp.le.s32.totalorder 1, %s15
      %p189 = scmp.lt.s32.totalorder %s15, 7
      %p190 = pnand %p188, %p189
      %p191 = pneg %p190
      // Predicated region
      $region29: #{tpu_custom_call.1} parent=5 // pred_check
        _
      $region30: #{tpu_custom_call.1} parent=5 // pred_check_branch
        %193 = sbr.rel (%p190) target = $region32
      $region31: #{tpu_custom_call.1} parent=5 // pred_region
        %s194 = ssub.s32 %s15, 1
        %s195 = sand.u32 %s66, 1
        %s196 = scalar_lea.sflag [#allocation5], %s195
        %s197 = sand.u32 %s66, 1
        %s198 = smul.addr %s197, 64
        %s199 = scalar_lea.vmem [#allocation4], %s198
        // Predicated region
        $region33: #{tpu_custom_call.1} parent=31 // pred_check
          %p200 = pneg %p79
        $region34: #{tpu_custom_call.1} parent=31 // pred_check_branch
          %202 = sbr.rel (%p200) target = $region36
        $region35: #{tpu_custom_call.1} parent=31 // pred_region
          %203 = dma.done %s196, 1024
        $region36: #{tpu_custom_call.1} parent=31 // pred_fallthru
          _
        %s204 = smul.u32 4, %s24
        %p205 = scmp.lt.s32.totalorder %s204, 7
        %s206 = scalar_select %p205, %s204, 7
        %s207 = smul.addr %s206, 4
        %s208 = scalar_lea.vmem %s0, %s207
        %p209 = pneg %p53
        %p210 = pneg %p50
        %s211 = sand.u32 %s66, 1
        %s212 = scalar_lea.sflag [#allocation5], %s211
        %s213 = sand.u32 %s66, 1
        %s214 = smul.addr %s213, 64
        %s215 = scalar_lea.vmem [#allocation4], %s214
        %p216 = pneg %p79
        %p217 = pneg %p76
        %s218 = smul.u32 4, %s24
        %p219 = scmp.lt.s32.totalorder %s218, 7
        %s220 = scalar_select %p219, %s218, 7
        %s221 = smul.addr %s220, 8
        %s222 = scalar_lea.vmem %s2, %s221
        %p223 = pneg %p105
        %p224 = pneg %p102
        %p225 = pneg %p131
        %p226 = pneg %p128
        %s227 = sand.u32 %s118, 1
        %s228 = scalar_lea.sflag [#allocation6], %s227
        %s229 = sand.u32 %s118, 1
        %s230 = scalar_lea.vmem [#allocation7], %s229
        %s231 = smul.u32 4, %s24
        %p232 = scmp.lt.s32.totalorder %s231, 7
        %s233 = scalar_select %p232, %s231, 7
        %s234 = smul.addr %s233, 4
        %s235 = scalar_lea.vmem %s0, %s234
        %s236 = smul.u32 4, %s24
        %s237 = smul.u32 4, %s24
        %p238 = scmp.lt.s32.totalorder %s237, 7
        %s239 = scalar_select %p238, %s237, 7
        %s240 = smul.addr %s239, 8
        %s241 = scalar_lea.vmem %s2, %s240
        %s242 = smul.u32 4, %s24
        %p244 = scmp.eq.s32.totalorder %s25, 0
        // Predicated region
        $region37: #{tpu_custom_call.1} parent=31 // pred_check
          %p245 = pneg %p244
        $region38: #{tpu_custom_call.1} parent=31 // pred_check_branch
          %247 = sbr.rel (%p245) target = $region40
        $region39: #{tpu_custom_call.1} parent=31 // pred_region
          %vm248 = vcmask 7168
          %249 = vst.msk [vmem:[#allocation2] sm:$0xff] %vm248, -inf
          %250 = vst.msk [vmem:[#allocation2 + $0x8] sm:$0xff] %vm248, -inf
          %251 = vst.msk [vmem:[#allocation2 + $0x10] sm:$0xff] %vm248, -inf
          %252 = vst.msk [vmem:[#allocation2 + $0x18] sm:$0xff] %vm248, -inf
          %253 = vst.msk [vmem:[#allocation3] sm:$0xff] %vm248, 0.0
          %254 = vst.msk [vmem:[#allocation3 + $0x8] sm:$0xff] %vm248, 0.0
          %255 = vst.msk [vmem:[#allocation3 + $0x10] sm:$0xff] %vm248, 0.0
          %256 = vst.msk [vmem:[#allocation3 + $0x18] sm:$0xff] %vm248, 0.0
        $region40: #{tpu_custom_call.1} parent=31 // pred_fallthru
          _
        %v257 = vld [vmem:[%s235] sm:$0xf]
        %v258 = vld [vmem:[%s235 + $0x4] sm:$0xf]
        %v259 = vld [vmem:[%s235 + $0x8] sm:$0xf]
        %v260 = vld [vmem:[%s235 + $0xc] sm:$0xf]
        %v261 = vld [vmem:[%s199] sm:$0xf]
        %v262 = vld [vmem:[%s199 + $0x4] sm:$0xf]
        %v263 = vld [vmem:[%s199 + $0x8] sm:$0xf]
        %v264 = vld [vmem:[%s199 + $0xc] sm:$0xf]
        %v265 = vld [vmem:[%s199 + $0x10] sm:$0xf]
        %v266 = vld [vmem:[%s199 + $0x14] sm:$0xf]
        %v267 = vld [vmem:[%s199 + $0x18] sm:$0xf]
        %v268 = vld [vmem:[%s199 + $0x1c] sm:$0xf]
        %v269 = vld [vmem:[%s199 + $0x20] sm:$0xf]
        %v270 = vld [vmem:[%s199 + $0x24] sm:$0xf]
        %v271 = vld [vmem:[%s199 + $0x28] sm:$0xf]
        %v272 = vld [vmem:[%s199 + $0x2c] sm:$0xf]
        %v273 = vld [vmem:[%s199 + $0x30] sm:$0xf]
        %v274 = vld [vmem:[%s199 + $0x34] sm:$0xf]
        %v275 = vld [vmem:[%s199 + $0x38] sm:$0xf]
        %v276 = vld [vmem:[%s199 + $0x3c] sm:$0xf]
        %v281 = vunpack.c.l.b16 %v257
        %v282 = vunpack.c.l.b16 %v258
        %v283 = vunpack.c.l.b16 %v259
        %v284 = vunpack.c.l.b16 %v260
        %v285 = vpack.c.b16 %v282, %v281
        %v286 = vpack.c.b16 %v284, %v283
        %v305 = vunpack.c.l.b16 %v261
        %v306 = vunpack.c.l.b16 %v262
        %v307 = vunpack.c.l.b16 %v263
        %v308 = vunpack.c.l.b16 %v264
        %v309 = vunpack.c.l.b16 %v265
        %v310 = vunpack.c.l.b16 %v266
        %v311 = vunpack.c.l.b16 %v267
        %v312 = vunpack.c.l.b16 %v268
        %v313 = vunpack.c.l.b16 %v269
        %v314 = vunpack.c.l.b16 %v270
        %v315 = vunpack.c.l.b16 %v271
        %v316 = vunpack.c.l.b16 %v272
        %v317 = vunpack.c.l.b16 %v273
        %v318 = vunpack.c.l.b16 %v274
        %v319 = vunpack.c.l.b16 %v275
        %v320 = vunpack.c.l.b16 %v276
        %v321 = vpack.c.b16 %v306, %v305
        %v322 = vpack.c.b16 %v308, %v307
        %v323 = vpack.c.b16 %v310, %v309
        %v324 = vpack.c.b16 %v312, %v311
        %v325 = vpack.c.b16 %v314, %v313
        %v326 = vpack.c.b16 %v316, %v315
        %v327 = vpack.c.b16 %v318, %v317
        %v328 = vpack.c.b16 %v320, %v319
        %337 = vmatprep.subr.bf16.mxu0 0
        %338 = vmatpush1.bf16.msra.mxu0 %v321
        %339 = vmatprep.subr.bf16.mxu0 0
        %340 = vmatpush1.bf16.msra.mxu0 %v322
        %341 = vmatprep.subr.bf16.mxu0 0
        %342 = vmatpush1.bf16.msra.mxu0 %v323
        %343 = vmatprep.subr.bf16.mxu0 0
        %344 = vmatpush1.bf16.msra.mxu0 %v324
        %345 = vmatprep.subr.bf16.mxu0 0
        %346 = vmatpush1.bf16.msra.mxu0 %v325
        %347 = vmatprep.subr.bf16.mxu0 0
        %348 = vmatpush1.bf16.msra.mxu0 %v326
        %349 = vmatprep.subr.bf16.mxu0 0
        %350 = vmatpush1.bf16.msra.mxu0 %v327
        %351 = vmatprep.subr.bf16.mxu0 0
        %352 = vmatpush1.bf16.msra.mxu0 %v328
        %353 = vmatprep.subr.bf16.mxu0 0
        %354 = vmatpush1.bf16.msra.mxu0 0
        %355 = vmatprep.subr.bf16.mxu0 0
        %356 = vmatpush1.bf16.msra.mxu0 0
        %357 = vmatprep.subr.bf16.mxu0 0
        %358 = vmatpush1.bf16.msra.mxu0 0
        %359 = vmatprep.subr.bf16.mxu0 0
        %360 = vmatpush1.bf16.msra.mxu0 0
        %361 = vmatprep.subr.bf16.mxu0 0
        %362 = vmatpush1.bf16.msra.mxu0 0
        %363 = vmatprep.subr.bf16.mxu0 0
        %364 = vmatpush1.bf16.msra.mxu0 0
        %365 = vmatprep.subr.bf16.mxu0 0
        %366 = vmatpush1.bf16.msra.mxu0 0
        %367 = vmatprep.subr.bf16.mxu0 0
        %368 = vmatpush1.bf16.msra.mxu0 0
        %369 = vmatprep.mubr.bf16.mxu0 0
        %370 = vmatmul.mubr.bf16.gmra.mrb[0].mxu0 %v285
        %v371 = vpop.f32.mrb[0].mxu0
        %v372 = vadd.f32 0.0, %v371
        %v373 = vpop.f32.mrb[0].mxu0
        %v374 = vpop.f32.mrb[0].mxu0
        %v375 = vadd.f32 0.0, %v374
        %v376 = vpop.f32.mrb[0].mxu0
        %377 = vmatprep.mubr.bf16.mxu0 0
        %378 = vmatmul.mubr.bf16.gmra.mrb[0].mxu0 %v286
        %v379 = vpop.f32.mrb[0].mxu0
        %v380 = vadd.f32 0.0, %v379
        %v381 = vpop.f32.mrb[0].mxu0
        %v382 = vpop.f32.mrb[0].mxu0
        %v383 = vadd.f32 0.0, %v382
        %v384 = vpop.f32.mrb[0].mxu0
        %385 = vdwg.mxu0
        %v386 = vld [vmem:[#allocation2] sm:$0xff]
        %v387 = vld [vmem:[#allocation2 + $0x8] sm:$0xff]
        %v388 = vld [vmem:[#allocation2 + $0x10] sm:$0xff]
        %v389 = vld [vmem:[#allocation2 + $0x18] sm:$0xff]
        %390 = vmax.xlane.f32.xlu0 %v372
        %v391 = vpop.xlane.xlu0 %390
        %392 = vmax.xlane.f32.xlu0 %v375
        %v393 = vpop.xlane.xlu0 %392
        %394 = vmax.xlane.f32.xlu0 %v380
        %v395 = vpop.xlane.xlu0 %394
        %396 = vmax.xlane.f32.xlu0 %v383
        %v397 = vpop.xlane.xlu0 %396
        %v398 = vmax.f32 %v386, %v391
        %v399 = vmax.f32 %v387, %v393
        %v400 = vmax.f32 %v388, %v395
        %v401 = vmax.f32 %v389, %v397
        %v402 = vld [vmem:[#allocation3] sm:$0xff]
        %v403 = vld [vmem:[#allocation3 + $0x8] sm:$0xff]
        %v404 = vld [vmem:[#allocation3 + $0x10] sm:$0xff]
        %v405 = vld [vmem:[#allocation3 + $0x18] sm:$0xff]
        %v406 = vsub.f32 %v386, %v398
        %v407 = vsub.f32 %v387, %v399
        %v408 = vsub.f32 %v388, %v400
        %v409 = vsub.f32 %v389, %v401
        %v410 = vmul.f32 %v406, 1.442695
        %v411 = vpow.pop %v410
        %v412 = vmul.f32 %v407, 1.442695
        %v413 = vpow.pop %v412
        %v414 = vmul.f32 %v408, 1.442695
        %v415 = vpow.pop %v414
        %v416 = vmul.f32 %v409, 1.442695
        %v417 = vpow.pop %v416
        %v418 = vmul.f32 %v402, %v411
        %v419 = vmul.f32 %v403, %v413
        %v420 = vmul.f32 %v404, %v415
        %v421 = vmul.f32 %v405, %v417
        %423 = vset.pattern.permute.xlu0 0
        %424 = vperm.xlu0 %423, %v398
        %v425 = vpop.permute.xlu0 %424
        %428 = vset.pattern.permute.xlu0 0
        %429 = vperm.xlu0 %428, %v399
        %v430 = vpop.permute.xlu0 %429
        %433 = vset.pattern.permute.xlu0 0
        %434 = vperm.xlu0 %433, %v400
        %v435 = vpop.permute.xlu0 %434
        %438 = vset.pattern.permute.xlu0 0
        %439 = vperm.xlu0 %438, %v401
        %v440 = vpop.permute.xlu0 %439
        %v442 = vsub.f32 %v372, %v425
        %v443 = vsub.f32 %v375, %v430
        %v444 = vsub.f32 %v380, %v435
        %v445 = vsub.f32 %v383, %v440
        %v446 = vmul.f32 %v442, 1.442695
        %v447 = vpow.pop %v446
        %v448 = vmul.f32 %v443, 1.442695
        %v449 = vpow.pop %v448
        %v450 = vmul.f32 %v444, 1.442695
        %v451 = vpow.pop %v450
        %v452 = vmul.f32 %v445, 1.442695
        %v453 = vpow.pop %v452
        %454 = vadd.xlane.f32.xlu0 %v447
        %v455 = vpop.xlane.xlu0 %454
        %456 = vadd.xlane.f32.xlu0 %v449
        %v457 = vpop.xlane.xlu0 %456
        %458 = vadd.xlane.f32.xlu0 %v451
        %v459 = vpop.xlane.xlu0 %458
        %460 = vadd.xlane.f32.xlu0 %v453
        %v461 = vpop.xlane.xlu0 %460
        %v462 = vadd.f32 %v418, %v455
        %v463 = vadd.f32 %v419, %v457
        %v464 = vadd.f32 %v420, %v459
        %v465 = vadd.f32 %v421, %v461
        %vm466 = vcmask 7168
        %467 = vst.msk [vmem:[#allocation3] sm:$0xff] %vm466, %v462
        %468 = vst.msk [vmem:[#allocation3 + $0x8] sm:$0xff] %vm466, %v463
        %469 = vst.msk [vmem:[#allocation3 + $0x10] sm:$0xff] %vm466, %v464
        %470 = vst.msk [vmem:[#allocation3 + $0x18] sm:$0xff] %vm466, %v465
        %471 = vst.msk [vmem:[#allocation2] sm:$0xff] %vm466, %v398
        %472 = vst.msk [vmem:[#allocation2 + $0x8] sm:$0xff] %vm466, %v399
        %473 = vst.msk [vmem:[#allocation2 + $0x10] sm:$0xff] %vm466, %v400
        %474 = vst.msk [vmem:[#allocation2 + $0x18] sm:$0xff] %vm466, %v401
        %p475 = scmp.eq.s32.totalorder %s25, 2
        // Predicated region
        $region41: #{tpu_custom_call.1} parent=31 // pred_check
          %p476 = pneg %p475
        $region42: #{tpu_custom_call.1} parent=31 // pred_check_branch
          %478 = sbr.rel (%p476) target = $region44
        $region43: #{tpu_custom_call.1} parent=31 // pred_region
          %v479 = vld [vmem:[%s241] sm:$0xff]
          %v480 = vld [vmem:[%s241 + $0x8] sm:$0xff]
          %v481 = vld [vmem:[%s241 + $0x10] sm:$0xff]
          %v482 = vld [vmem:[%s241 + $0x18] sm:$0xff]
          %v483 = vld [vmem:[#allocation3] sm:$0xff]
          %v484 = vld [vmem:[#allocation3 + $0x8] sm:$0xff]
          %v485 = vld [vmem:[#allocation3 + $0x10] sm:$0xff]
          %v486 = vld [vmem:[#allocation3 + $0x18] sm:$0xff]
          %v487 = vld [vmem:[#allocation2] sm:$0xff]
          %v488 = vld [vmem:[#allocation2 + $0x8] sm:$0xff]
          %v489 = vld [vmem:[#allocation2 + $0x10] sm:$0xff]
          %v490 = vld [vmem:[#allocation2 + $0x18] sm:$0xff]
          %v491 = vsub.f32 0.0, %v487
          %v492 = vsub.f32 0.0, %v488
          %v493 = vsub.f32 0.0, %v489
          %v494 = vsub.f32 0.0, %v490
          %v495 = vmul.f32 %v491, 1.442695
          %v496 = vpow.pop %v495
          %v497 = vmul.f32 %v492, 1.442695
          %v498 = vpow.pop %v497
          %v499 = vmul.f32 %v493, 1.442695
          %v500 = vpow.pop %v499
          %v501 = vmul.f32 %v494, 1.442695
          %v502 = vpow.pop %v501
          %v503 = vmul.f32 %v496, 64.0
          %v504 = vmul.f32 %v498, 64.0
          %v505 = vmul.f32 %v500, 64.0
          %v506 = vmul.f32 %v502, 64.0
          %v507 = vsub.f32 %v483, %v503
          %v508 = vsub.f32 %v484, %v504
          %v509 = vsub.f32 %v485, %v505
          %v510 = vsub.f32 %v486, %v506
          %v511 = vlog2.pop %v507
          %v512 = vmul.f32 %v511, 0.6931472
          %v513 = vlog2.pop %v508
          %v514 = vmul.f32 %v513, 0.6931472
          %v515 = vlog2.pop %v509
          %v516 = vmul.f32 %v515, 0.6931472
          %v517 = vlog2.pop %v510
          %v518 = vmul.f32 %v517, 0.6931472
          %v519 = vadd.f32 %v512, %v487
          %v520 = vadd.f32 %v514, %v488
          %v521 = vadd.f32 %v516, %v489
          %v522 = vadd.f32 %v518, %v490
          %v523 = vsub.f32 %v519, %v479
          %v524 = vsub.f32 %v520, %v480
          %v525 = vsub.f32 %v521, %v481
          %v526 = vsub.f32 %v522, %v482
          %531 = vrot.lane.b32.xlu0 %v479, 127
          %v532 = vpop.permute.xlu0 %531
          %533 = vrot.lane.b32.xlu0 %v480, 127
          %v534 = vpop.permute.xlu0 %533
          %535 = vrot.lane.b32.xlu0 %v481, 127
          %v536 = vpop.permute.xlu0 %535
          %537 = vrot.lane.b32.xlu0 %v482, 127
          %v538 = vpop.permute.xlu0 %537
          %v543 = vmul.f32 %v523, %v532
          %v544 = vmul.f32 %v524, %v534
          %v545 = vmul.f32 %v525, %v536
          %v546 = vmul.f32 %v526, %v538
          %v547 = vsel %vm466, %v543, 0.0
          %v548 = vsel %vm466, %v544, 0.0
          %v549 = vadd.f32 %v547, %v548
          %v550 = vsel %vm466, %v545, 0.0
          %v551 = vadd.f32 %v549, %v550
          %v552 = vsel %vm466, %v546, 0.0
          %v553 = vadd.f32 %v551, %v552
          %554 = vadd.xlane.f32.xlu0 %v553
          %v555 = vpop.xlane.xlu0 %554
          %v556 = vrot.slane %v555, 4
          %v557 = vadd.f32 %v555, %v556
          %v558 = vrot.slane %v557, 2
          %v559 = vadd.f32 %v557, %v558
          %v560 = vrot.slane %v559, 1
          %v561 = vadd.f32 %v559, %v560
          %s562 = vtos %v561
          %v563 = vsel %vm466, %v532, 0.0
          %v564 = vsel %vm466, %v534, 0.0
          %v565 = vadd.f32 %v563, %v564
          %v566 = vsel %vm466, %v536, 0.0
          %v567 = vadd.f32 %v565, %v566
          %v568 = vsel %vm466, %v538, 0.0
          %v569 = vadd.f32 %v567, %v568
          %570 = vadd.xlane.f32.xlu0 %v569
          %v571 = vpop.xlane.xlu0 %570
          %v572 = vrot.slane %v571, 4
          %v573 = vadd.f32 %v571, %v572
          %v574 = vrot.slane %v573, 2
          %v575 = vadd.f32 %v573, %v574
          %v576 = vrot.slane %v575, 1
          %v577 = vadd.f32 %v575, %v576
          %s578 = vtos %v577
          %v579 = vlaneseq
          %v580 = vand.u32 %v579, 127
          %vm581 = vcmp.eq.s32.totalorder %v580, 0
          %vm582 = vcmp.eq.s32.totalorder %v580, 1
          %v583 = vstv %s578
          %v584 = vsel %vm582, %v583, 0.0
          %v585 = vstv %s562
          %v586 = vsel %vm581, %v585, %v584
          %587 = vst [vmem:[%s230] sm:$0x1] %v586
        $region44: #{tpu_custom_call.1} parent=31 // pred_fallthru
          _
        %s588 = sand.u32 %s118, 1
        %s589 = scalar_lea.sflag [#allocation6], %s588
        %s590 = sand.u32 %s118, 1
        %s591 = scalar_lea.vmem [#allocation7], %s590
        // Predicated region
        $region45: #{tpu_custom_call.1} parent=31 // pred_check
          %p592 = pneg %p128
        $region46: #{tpu_custom_call.1} parent=31 // pred_check_branch
          %594 = sbr.rel (%p592) target = $region48
        $region47: #{tpu_custom_call.1} parent=31 // pred_region
          %s596 = ssub.s32 16, 16
          %597 = vsyncadd %s589, %s596
          %s598 = smul.addr %s24, 16
          %s599 = scalar_lea.hbm %s3, %s598
          %s601 = sshll.u32 %s591, 4
          %s602 = int_to_ptr.vmem [resolvable:$true] %s601
          %604 = dma.vmem_to_hbm [thread:$0]  %s602, 16, %s599, %s589
        $region48: #{tpu_custom_call.1} parent=31 // pred_fallthru
          _
      $region32: #{tpu_custom_call.1} parent=5 // pred_fallthru
        _
      %p605 = scmp.le.s32.totalorder 2, %s15
      // Predicated region
      $region49: #{tpu_custom_call.1} parent=5 // pred_check
        %p606 = pneg %p605
      $region50: #{tpu_custom_call.1} parent=5 // pred_check_branch
        %608 = sbr.rel (%p606) target = $region52
      $region51: #{tpu_custom_call.1} parent=5 // pred_region
        %s609 = ssub.s32 %s15, 2
        // Predicated region
        $region53: #{tpu_custom_call.1} parent=51 // pred_check
          %p610 = pneg %p134
        $region54: #{tpu_custom_call.1} parent=51 // pred_check_branch
          %612 = sbr.rel (%p610) target = $region56
        $region55: #{tpu_custom_call.1} parent=51 // pred_region
          %s613 = sand.u32 %s119, 1
          %s614 = scalar_lea.sflag [#allocation6], %s613
          %s615 = sand.u32 %s119, 1
          %s616 = scalar_lea.vmem [#allocation7], %s615
          %617 = dma.done %s614, 16
        $region56: #{tpu_custom_call.1} parent=51 // pred_fallthru
          _
      $region52: #{tpu_custom_call.1} parent=5 // pred_fallthru
        _
    $region6: #{tpu_custom_call.1} parent=1 // loop_footer
      %s19 = sadd.s32 1, %s15
    $region7: #{tpu_custom_call.1} parent=1 // loop_footer_branch
      %14 = sbr.rel target = $region3
    $region8: #{tpu_custom_call.1} parent=1 // loop_exit
      _
    %618 = vsyncpa [#allocation5], 1
    %s619 = scalar_lea.sflag [#allocation5], 1
    %620 = vsyncpa %s619, 1
    %621 = vsyncpa [#allocation6], 1
    %s622 = scalar_lea.sflag [#allocation6], 1
    %623 = vsyncpa %s622, 1

</llo_original>
